<compile_context>
chip_gen: v5e
topology: v5e:2x2
jax: 0.10.0
libtpu: 0.0.40
codegen_flags: <defaults>
</compile_context>

<pallas_src>
import functools

import jax
import jax.numpy as jnp
from jax.experimental import pallas as pl
from jax.experimental.pallas import tpu as pltpu

LANE = 128
SUBLANE = 8


def _round_up(x, m):
    return ((x + m - 1) // m) * m


def _policy_mlp_kernel(x_ref, w1_ref, b1_ref, w2_ref, b2_ref, w3_ref, b3_ref,
                       q_ref, a_ref, *, num_actions):
    # x: (TB, S_pad) bf16 ; weights bf16 ; biases f32 ; f32 accumulation on the MXU.
    x = x_ref[...]

    h1 = jnp.dot(x, w1_ref[...], preferred_element_type=jnp.float32) + b1_ref[...]
    h1 = jnp.maximum(h1, 0.0).astype(jnp.bfloat16)

    h2 = jnp.dot(h1, w2_ref[...], preferred_element_type=jnp.float32) + b2_ref[...]
    h2 = jnp.maximum(h2, 0.0).astype(jnp.bfloat16)

    q = jnp.dot(h2, w3_ref[...], preferred_element_type=jnp.float32) + b3_ref[...]
    q_ref[...] = q.astype(q_ref.dtype)

    # Fused predict_best_action: argmax over the real action lanes only.
    lane = jax.lax.broadcasted_iota(jnp.int32, q.shape, 1)
    q_masked = jnp.where(lane < num_actions, q, jnp.float32(-jnp.inf))
    row_max = jnp.max(q_masked, axis=-1, keepdims=True)
    cand = jnp.where(q_masked == row_max, lane, jnp.int32(q.shape[-1]))
    a_ref[...] = jnp.min(cand, axis=-1, keepdims=True).astype(jnp.int32)  # first-max tie-break


def policy_model_forward(state_vector, params, num_actions, *, batch_tile=256):
    """Forward pass. Returns (q_values (B, num_actions) f32, best_action (B,) int32)."""
    w1, b1, w2, b2, w3, b3 = params  # padded; bf16 weights, f32 biases

    x = jnp.asarray(state_vector, jnp.float32)
    if x.ndim == 1:
        x = x[None, :]  # torch unsqueeze(0)
    B, S = x.shape

    S_pad, H1 = w1.shape
    H2p = w2.shape[1]
    Ap = w3.shape[1]

    # Batch tile: multiple of 8 sublanes; small batches pad up to exactly one tile.
    TB = min(batch_tile, _round_up(B, SUBLANE))
    B_pad = _round_up(B, TB)

    x_p = jnp.zeros((B_pad, S_pad), jnp.bfloat16).at[:B, :S].set(x.astype(jnp.bfloat16))

    flops = 2 * B_pad * (S_pad * H1 + H1 * H2p + H2p * Ap)
    bytes_accessed = (x_p.size * 2
                      + (w1.size + w2.size + w3.size) * 2
                      + (b1.size + b2.size + b3.size) * 4
                      + B_pad * Ap * 4 + B_pad * 4)

    kernel = functools.partial(_policy_mlp_kernel, num_actions=num_actions)

    q_pad, a_pad = pl.pallas_call(
        kernel,
        grid=(B_pad // TB,),
        out_shape=(jax.ShapeDtypeStruct((B_pad, Ap), jnp.float32),
                   jax.ShapeDtypeStruct((B_pad, 1), jnp.int32)),
        in_specs=[
            pl.BlockSpec((TB, S_pad), lambda i: (i, 0)),   # activations tile over batch
            pl.BlockSpec((S_pad, H1), lambda i: (0, 0)),   # weights resident across grid
            pl.BlockSpec((1, H1), lambda i: (0, 0)),
            pl.BlockSpec((H1, H2p), lambda i: (0, 0)),
            pl.BlockSpec((1, H2p), lambda i: (0, 0)),
            pl.BlockSpec((H2p, Ap), lambda i: (0, 0)),
            pl.BlockSpec((1, Ap), lambda i: (0, 0)),
        ],
        out_specs=(pl.BlockSpec((TB, Ap), lambda i: (i, 0)),
                   pl.BlockSpec((TB, 1), lambda i: (i, 0))),
        compiler_params=pltpu.CompilerParams(dimension_semantics=("parallel",)),
        cost_estimate=pl.CostEstimate(flops=flops, transcendentals=0,
                                      bytes_accessed=bytes_accessed),
    )(x_p, w1, b1, w2, b2, w3, b3)

    return q_pad[:B, :num_actions], a_pad[:B, 0]


def init_params(key, state_size, action_size, hidden_sizes=(128, 64)):
    """nn.Linear-style uniform(-1/sqrt(fan_in), 1/sqrt(fan_in)) init, zero-padded to
    128-lane multiples.  Weights stored bf16 (MXU operands), biases f32."""
    dims = [state_size, hidden_sizes[0], hidden_sizes[1], action_size]
    pdims = [_round_up(d, LANE) for d in dims]
    params = []
    for i in range(3):
        fan_in, fan_out = dims[i], dims[i + 1]
        key, kw, kb = jax.random.split(key, 3)
        bound = 1.0 / float(fan_in) ** 0.5
        w = jax.random.uniform(kw, (fan_in, fan_out), jnp.float32, -bound, bound)
        b = jax.random.uniform(kb, (1, fan_out), jnp.float32, -bound, bound)
        w_p = (jnp.zeros((pdims[i], pdims[i + 1]), jnp.bfloat16)
               .at[:fan_in, :fan_out].set(w.astype(jnp.bfloat16)))
        b_p = jnp.zeros((1, pdims[i + 1]), jnp.float32).at[:, :fan_out].set(b)
        params += [w_p, b_p]
    return tuple(params)


def _reference_forward(x, params, num_actions):
    """Pure-JAX reference with identical bf16 operand rounding / f32 accumulation."""
    w1, b1, w2, b2, w3, b3 = params
    x = jnp.asarray(x, jnp.float32)
    if x.ndim == 1:
        x = x[None, :]
    B, S = x.shape
    xb = jnp.zeros((B, w1.shape[0]), jnp.bfloat16).at[:, :S].set(x.astype(jnp.bfloat16))
    h1 = jnp.maximum(jnp.dot(xb, w1, preferred_element_type=jnp.float32) + b1, 0.0).astype(jnp.bfloat16)
    h2 = jnp.maximum(jnp.dot(h1, w2, preferred_element_type=jnp.float32) + b2, 0.0).astype(jnp.bfloat16)
    q = jnp.dot(h2, w3, preferred_element_type=jnp.float32) + b3
    return q[:, :num_actions]


# TODO(synk): update()/Adam optimizer, MSE loss backward, and save/load are host-side
# training utilities with no forward-kernel equivalent; only forward + predict_best_action
# (fused argmax) are implemented here.

if __name__ == "__main__":
    key = jax.random.PRNGKey(0)
    key, k_init, k_x = jax.random.split(key, 3)

    state_size = 32
    action_size = 8
    batch = 2

    params = init_params(k_init, state_size, action_size, hidden_sizes=(128, 64))
    x = jax.random.normal(k_x, (batch, state_size), dtype=jnp.float32)

    q_values, best_actions = policy_model_forward(x, params, action_size)
    q_values = jax.block_until_ready(q_values)
    best_actions = jax.block_until_ready(best_actions)

    ref_q = _reference_forward(x, params, action_size)
    assert q_values.shape == (batch, action_size)
    assert best_actions.shape == (batch,)
    assert jnp.allclose(q_values, ref_q, atol=2e-2, rtol=2e-2), "Q-value mismatch vs. reference"
    assert jnp.array_equal(best_actions,
                           jnp.argmax(ref_q, axis=-1).astype(jnp.int32)), "argmax mismatch"

    # predict_best_action equivalent for a single 1-D state vector (unsqueeze path).
    _, a_single = policy_model_forward(x[0], params, action_size)
    a_single = jax.block_until_ready(a_single)
    assert int(a_single[0]) == int(best_actions[0])

    print("KERNEL_OK")
</pallas_src>

<mosaic_0001>
module attributes {stable_mosaic.version = 11 : i64} {
  func.func @_policy_mlp_kernel(%arg0: i32, %arg1: memref<8x128xbf16, #tpu.memory_space<vmem>>, %arg2: memref<128x128xbf16, #tpu.memory_space<vmem>>, %arg3: memref<1x128xf32, #tpu.memory_space<vmem>>, %arg4: memref<128x128xbf16, #tpu.memory_space<vmem>>, %arg5: memref<1x128xf32, #tpu.memory_space<vmem>>, %arg6: memref<128x128xbf16, #tpu.memory_space<vmem>>, %arg7: memref<1x128xf32, #tpu.memory_space<vmem>>, %arg8: memref<8x128xf32, #tpu.memory_space<vmem>>, %arg9: memref<8x1xi32, #tpu.memory_space<vmem>>) attributes {dimension_semantics = [#tpu.dimension_semantics<parallel>], iteration_bounds = array<i64: 1>, scalar_prefetch = 0 : i64, scratch_operands = 0 : i64, tpu.core_type = #tpu.core_type<tc>, window_params = [{transform_indices = @transform_0, window_bounds = array<i64: 8, 128>}, {pipeline_mode = #tpu.pipeline_mode<synchronous>, transform_indices = @transform_1, window_bounds = array<i64: 128, 128>}, {pipeline_mode = #tpu.pipeline_mode<synchronous>, transform_indices = @transform_2, window_bounds = array<i64: 1, 128>}, {pipeline_mode = #tpu.pipeline_mode<synchronous>, transform_indices = @transform_3, window_bounds = array<i64: 128, 128>}, {pipeline_mode = #tpu.pipeline_mode<synchronous>, transform_indices = @transform_4, window_bounds = array<i64: 1, 128>}, {pipeline_mode = #tpu.pipeline_mode<synchronous>, transform_indices = @transform_5, window_bounds = array<i64: 128, 128>}, {pipeline_mode = #tpu.pipeline_mode<synchronous>, transform_indices = @transform_6, window_bounds = array<i64: 1, 128>}, {transform_indices = @transform_7, window_bounds = array<i64: 8, 128>}, {transform_indices = @transform_8, window_bounds = array<i64: 8, 1>}]} {
    %c0 = arith.constant 0 : index
    %c0_0 = arith.constant 0 : index
    %0 = vector.load %arg1[%c0, %c0_0] : memref<8x128xbf16, #tpu.memory_space<vmem>>, vector<8x128xbf16>
    %c0_1 = arith.constant 0 : index
    %c0_2 = arith.constant 0 : index
    %1 = vector.load %arg2[%c0_1, %c0_2] : memref<128x128xbf16, #tpu.memory_space<vmem>>, vector<128x128xbf16>
    %cst = arith.constant dense<0.000000e+00> : vector<8x128xf32>
    %2 = tpu.matmul %0, %1, %cst {dimension_numbers = #tpu.dot_dimension_numbers<[1], [0], [0], [1], [0, 0, 1, 1], [], []>} : vector<8x128xbf16>, vector<128x128xbf16>, vector<8x128xf32> -> vector<8x128xf32>
    %c0_3 = arith.constant 0 : index
    %c0_4 = arith.constant 0 : index
    %3 = vector.load %arg3[%c0_3, %c0_4] : memref<1x128xf32, #tpu.memory_space<vmem>>, vector<1x128xf32>
    %4 = vector.broadcast %3 : vector<1x128xf32> to vector<8x128xf32>
    %5 = arith.addf %2, %4 : vector<8x128xf32>
    %cst_5 = arith.constant 0.000000e+00 : f32
    %6 = vector.broadcast %cst_5 : f32 to vector<8x128xf32>
    %7 = arith.maximumf %5, %6 : vector<8x128xf32>
    %8 = arith.truncf %7 : vector<8x128xf32> to vector<8x128xbf16>
    %c0_6 = arith.constant 0 : index
    %c0_7 = arith.constant 0 : index
    %9 = vector.load %arg4[%c0_6, %c0_7] : memref<128x128xbf16, #tpu.memory_space<vmem>>, vector<128x128xbf16>
    %cst_8 = arith.constant dense<0.000000e+00> : vector<8x128xf32>
    %10 = tpu.matmul %8, %9, %cst_8 {dimension_numbers = #tpu.dot_dimension_numbers<[1], [0], [0], [1], [0, 0, 1, 1], [], []>} : vector<8x128xbf16>, vector<128x128xbf16>, vector<8x128xf32> -> vector<8x128xf32>
    %c0_9 = arith.constant 0 : index
    %c0_10 = arith.constant 0 : index
    %11 = vector.load %arg5[%c0_9, %c0_10] : memref<1x128xf32, #tpu.memory_space<vmem>>, vector<1x128xf32>
    %12 = vector.broadcast %11 : vector<1x128xf32> to vector<8x128xf32>
    %13 = arith.addf %10, %12 : vector<8x128xf32>
    %cst_11 = arith.constant 0.000000e+00 : f32
    %14 = vector.broadcast %cst_11 : f32 to vector<8x128xf32>
    %15 = arith.maximumf %13, %14 : vector<8x128xf32>
    %16 = arith.truncf %15 : vector<8x128xf32> to vector<8x128xbf16>
    %c0_12 = arith.constant 0 : index
    %c0_13 = arith.constant 0 : index
    %17 = vector.load %arg6[%c0_12, %c0_13] : memref<128x128xbf16, #tpu.memory_space<vmem>>, vector<128x128xbf16>
    %cst_14 = arith.constant dense<0.000000e+00> : vector<8x128xf32>
    %18 = tpu.matmul %16, %17, %cst_14 {dimension_numbers = #tpu.dot_dimension_numbers<[1], [0], [0], [1], [0, 0, 1, 1], [], []>} : vector<8x128xbf16>, vector<128x128xbf16>, vector<8x128xf32> -> vector<8x128xf32>
    %c0_15 = arith.constant 0 : index
    %c0_16 = arith.constant 0 : index
    %19 = vector.load %arg7[%c0_15, %c0_16] : memref<1x128xf32, #tpu.memory_space<vmem>>, vector<1x128xf32>
    %20 = vector.broadcast %19 : vector<1x128xf32> to vector<8x128xf32>
    %21 = arith.addf %18, %20 : vector<8x128xf32>
    %c0_17 = arith.constant 0 : index
    %c0_18 = arith.constant 0 : index
    %22 = vector.load %arg8[%c0_17, %c0_18] : memref<8x128xf32, #tpu.memory_space<vmem>>, vector<8x128xf32>
    tpu.vector_store %arg8[%c0_17, %c0_18], %21 {strides = array<i32>} : memref<8x128xf32, #tpu.memory_space<vmem>>, vector<8x128xf32>,
    %23 = tpu.iota {dimensions = array<i32: 1>} : vector<8x128xi32>
    %c8_i32 = arith.constant 8 : i32
    %24 = vector.broadcast %c8_i32 : i32 to vector<8x128xi32>
    %25 = arith.cmpi slt, %23, %24 : vector<8x128xi32>
    %cst_19 = arith.constant 0xFF800000 : f32
    %26 = vector.broadcast %cst_19 : f32 to vector<8x128xf32>
    %27 = arith.select %25, %21, %26 : vector<8x128xi1>, vector<8x128xf32>
    %cst_20 = arith.constant dense<0xFF800000> : vector<8xf32>
    %28 = vector.multi_reduction <maximumf>, %27, %cst_20 [1] : vector<8x128xf32> to vector<8xf32>
    %29 = vector.shape_cast %28 : vector<8xf32> to vector<8x1xf32>
    %30 = vector.broadcast %29 : vector<8x1xf32> to vector<8x128xf32>
    %31 = arith.cmpf oeq, %27, %30 : vector<8x128xf32>
    %c128_i32 = arith.constant 128 : i32
    %32 = vector.broadcast %c128_i32 : i32 to vector<8x128xi32>
    %33 = arith.select %31, %23, %32 : vector<8x128xi1>, vector<8x128xi32>
    %cst_21 = arith.constant dense<2147483647> : vector<8xi32>
    %34 = vector.multi_reduction <minsi>, %33, %cst_21 [1] : vector<8x128xi32> to vector<8xi32>
    %35 = vector.shape_cast %34 : vector<8xi32> to vector<8x1xi32>
    %c0_22 = arith.constant 0 : index
    %c0_23 = arith.constant 0 : index
    %36 = vector.load %arg9[%c0_22, %c0_23] : memref<8x1xi32, #tpu.memory_space<vmem>>, vector<8x1xi32>
    tpu.vector_store %arg9[%c0_22, %c0_23], %35 {strides = array<i32>} : memref<8x1xi32, #tpu.memory_space<vmem>>, vector<8x1xi32>,
    return
  }
  func.func @transform_0(%arg0: i32) -> (i32, i32) {
    %c0_i32 = arith.constant 0 : i32
    %c0_i32_0 = arith.constant 0 : i32
    return %arg0, %c0_i32 : i32, i32
  }
  func.func @transform_1(%arg0: i32) -> (i32, i32) {
    %c0_i32 = arith.constant 0 : i32
    %c0_i32_0 = arith.constant 0 : i32
    %c0_i32_1 = arith.constant 0 : i32
    return %c0_i32, %c0_i32_0 : i32, i32
  }
  func.func @transform_2(%arg0: i32) -> (i32, i32) {
    %c0_i32 = arith.constant 0 : i32
    %c0_i32_0 = arith.constant 0 : i32
    %c0_i32_1 = arith.constant 0 : i32
    return %c0_i32, %c0_i32_0 : i32, i32
  }
  func.func @transform_3(%arg0: i32) -> (i32, i32) {
    %c0_i32 = arith.constant 0 : i32
    %c0_i32_0 = arith.constant 0 : i32
    %c0_i32_1 = arith.constant 0 : i32
    return %c0_i32, %c0_i32_0 : i32, i32
  }
  func.func @transform_4(%arg0: i32) -> (i32, i32) {
    %c0_i32 = arith.constant 0 : i32
    %c0_i32_0 = arith.constant 0 : i32
    %c0_i32_1 = arith.constant 0 : i32
    return %c0_i32, %c0_i32_0 : i32, i32
  }
  func.func @transform_5(%arg0: i32) -> (i32, i32) {
    %c0_i32 = arith.constant 0 : i32
    %c0_i32_0 = arith.constant 0 : i32
    %c0_i32_1 = arith.constant 0 : i32
    return %c0_i32, %c0_i32_0 : i32, i32
  }
  func.func @transform_6(%arg0: i32) -> (i32, i32) {
    %c0_i32 = arith.constant 0 : i32
    %c0_i32_0 = arith.constant 0 : i32
    %c0_i32_1 = arith.constant 0 : i32
    return %c0_i32, %c0_i32_0 : i32, i32
  }
  func.func @transform_7(%arg0: i32) -> (i32, i32) {
    %c0_i32 = arith.constant 0 : i32
    %c0_i32_0 = arith.constant 0 : i32
    return %arg0, %c0_i32 : i32, i32
  }
  func.func @transform_8(%arg0: i32) -> (i32, i32) {
    %c0_i32 = arith.constant 0 : i32
    %c0_i32_0 = arith.constant 0 : i32
    return %arg0, %c0_i32 : i32, i32
  }
}

</mosaic_0001>

<llo_original>
// kernel: tpu_custom_call.1
$region0: #{tpu_custom_call.1}
  #allocation0 [shape = 'u32[]', space=smem, size = 0x4, offset = 0x4, fixed_abs, tag = 'smem constant byte address 0x4 - core index']
  #allocation1 [shape = 'u32[72,128]{1,0:T(1,128)}', space=vmem, size = 0x9000, scoped, tag = 'internal scratch']
  %s0 = inlined_call_operand.hbm [shape: bf16[8,128], index: 0, kind: input, shape index: {}]
  %s1 = inlined_call_operand.hbm [shape: bf16[128,128], index: 1, kind: input, shape index: {}]
  %s2 = inlined_call_operand.vmem [shape: f32[1,128], index: 2, kind: input, shape index: {}]
  %s3 = inlined_call_operand.hbm [shape: bf16[128,128], index: 3, kind: input, shape index: {}]
  %s4 = inlined_call_operand.vmem [shape: f32[1,128], index: 4, kind: input, shape index: {}]
  %s5 = inlined_call_operand.hbm [shape: bf16[128,128], index: 5, kind: input, shape index: {}]
  %s6 = inlined_call_operand.vmem [shape: f32[1,128], index: 6, kind: input, shape index: {}]
  %s7 = inlined_call_operand.hbm [shape: f32[8,128], index: 7, kind: output, shape index: {0}]
  %s8 = inlined_call_operand.vmem [shape: s32[8,1], index: 8, kind: output, shape index: {1}]
  %9 = xla_tuple %s7, %s8
  %s10 = sld [smem:[#allocation0]]
  $region62: #{tpu_custom_call.1} parent=0
    _
  %s12 = ssub.s32 1, %s10
  %s13 = scalar_select 0, %s12, %s10
  $region1: #{tpu_custom_call.1} parent=0
    #allocation2 [shape = 'u8[2048]{0}', space=vmem, size = 0x800, scoped, tag = 'input window, operand 0, single buffered']
    #allocation3 [shape = 's32[1]{0}', space=sflag, size = 0x4, scoped, tag = 'scoped memory for tpu_custom_call.1']
    #allocation4 [shape = 's32[1]{0}', space=sflag, size = 0x4, scoped, tag = 'scoped memory for tpu_custom_call.1']
    #allocation5 [shape = 'u8[32768]{0}', space=vmem, size = 0x8000, scoped, tag = 'input window, operand 1, single buffered']
    #allocation6 [shape = 's32[1]{0}', space=sflag, size = 0x4, scoped, tag = 'scoped memory for tpu_custom_call.1']
    #allocation7 [shape = 'u8[32768]{0}', space=vmem, size = 0x8000, scoped, tag = 'input window, operand 3, single buffered']
    #allocation8 [shape = 'u8[32768]{0}', space=vmem, size = 0x8000, scoped, tag = 'input window, operand 5, single buffered']
    #allocation9 [shape = 's32[1]{0}', space=sflag, size = 0x4, scoped, tag = 'scoped memory for tpu_custom_call.1']
    #allocation10 [shape = 'u8[4096]{0}', space=vmem, size = 0x1000, scoped, tag = 'output window, operand 0, single buffered']
    %14 = vsyncpa [#allocation3], 0
    %15 = vsyncpa [#allocation6], 0
    %16 = vsyncpa [#allocation9], 0
    %17 = vsyncpa [#allocation4], 0
    // Predicated region
    $region2: #{tpu_custom_call.1} parent=1 // pred_check
      _
    $region3: #{tpu_custom_call.1} parent=1 // pred_check_branch
      %19 = sbr.rel (0) target = $region5
    $region4: #{tpu_custom_call.1} parent=1 // pred_region
      %21 = vsyncadd [#allocation3], 0
      %s23 = sshll.u32 %s0, 4
      %s24 = int_to_ptr.hbm [resolvable:$true] %s23
      %s25 = sshll.u32 [#allocation2], 4
      %s26 = int_to_ptr.vmem [resolvable:$true] %s25
      %28 = dma.hbm_to_vmem [thread:$0]  %s24, 64, %s26, [#allocation3]
    $region5: #{tpu_custom_call.1} parent=1 // pred_fallthru
      _
    // Predicated region
    $region6: #{tpu_custom_call.1} parent=1 // pred_check
      _
    $region7: #{tpu_custom_call.1} parent=1 // pred_check_branch
      %30 = sbr.rel (0) target = $region9
    $region8: #{tpu_custom_call.1} parent=1 // pred_region
      %32 = vsyncadd [#allocation6], 0
      %s33 = sshll.u32 %s1, 4
      %s34 = int_to_ptr.hbm [resolvable:$true] %s33
      %s35 = sshll.u32 [#allocation5], 4
      %s36 = int_to_ptr.vmem [resolvable:$true] %s35
      %41 = dma.hbm_to_vmem [thread:$0]  %s34, 1024, %s36, [#allocation6], 64, 64, 4
    $region9: #{tpu_custom_call.1} parent=1 // pred_fallthru
      _
    // Predicated region
    $region10: #{tpu_custom_call.1} parent=1 // pred_check
      _
    $region11: #{tpu_custom_call.1} parent=1 // pred_check_branch
      %43 = sbr.rel (0) target = $region13
    $region12: #{tpu_custom_call.1} parent=1 // pred_region
      _
    $region13: #{tpu_custom_call.1} parent=1 // pred_fallthru
      _
    // Predicated region
    $region14: #{tpu_custom_call.1} parent=1 // pred_check
      _
    $region15: #{tpu_custom_call.1} parent=1 // pred_check_branch
      %45 = sbr.rel (0) target = $region17
    $region16: #{tpu_custom_call.1} parent=1 // pred_region
      %47 = vsyncadd [#allocation6], 0
      %s48 = sshll.u32 %s3, 4
      %s49 = int_to_ptr.hbm [resolvable:$true] %s48
      %s50 = sshll.u32 [#allocation7], 4
      %s51 = int_to_ptr.vmem [resolvable:$true] %s50
      %56 = dma.hbm_to_vmem [thread:$0]  %s49, 1024, %s51, [#allocation6], 64, 64, 4
    $region17: #{tpu_custom_call.1} parent=1 // pred_fallthru
      _
    // Predicated region
    $region18: #{tpu_custom_call.1} parent=1 // pred_check
      _
    $region19: #{tpu_custom_call.1} parent=1 // pred_check_branch
      %58 = sbr.rel (0) target = $region21
    $region20: #{tpu_custom_call.1} parent=1 // pred_region
      _
    $region21: #{tpu_custom_call.1} parent=1 // pred_fallthru
      _
    // Predicated region
    $region22: #{tpu_custom_call.1} parent=1 // pred_check
      _
    $region23: #{tpu_custom_call.1} parent=1 // pred_check_branch
      %60 = sbr.rel (0) target = $region25
    $region24: #{tpu_custom_call.1} parent=1 // pred_region
      %62 = vsyncadd [#allocation9], 0
      %s63 = sshll.u32 %s5, 4
      %s64 = int_to_ptr.hbm [resolvable:$true] %s63
      %s65 = sshll.u32 [#allocation8], 4
      %s66 = int_to_ptr.vmem [resolvable:$true] %s65
      %71 = dma.hbm_to_vmem [thread:$0]  %s64, 1024, %s66, [#allocation9], 64, 64, 4
    $region25: #{tpu_custom_call.1} parent=1 // pred_fallthru
      _
    // Predicated region
    $region26: #{tpu_custom_call.1} parent=1 // pred_check
      _
    $region27: #{tpu_custom_call.1} parent=1 // pred_check_branch
      %73 = sbr.rel (0) target = $region29
    $region28: #{tpu_custom_call.1} parent=1 // pred_region
      _
    $region29: #{tpu_custom_call.1} parent=1 // pred_fallthru
      _
    // Predicated region
    $region30: #{tpu_custom_call.1} parent=1 // pred_check
      _
    $region31: #{tpu_custom_call.1} parent=1 // pred_check_branch
      %75 = sbr.rel (0) target = $region33
    $region32: #{tpu_custom_call.1} parent=1 // pred_region
      %77 = dma.done [#allocation3], 64
    $region33: #{tpu_custom_call.1} parent=1 // pred_fallthru
      _
    // Predicated region
    $region34: #{tpu_custom_call.1} parent=1 // pred_check
      _
    $region35: #{tpu_custom_call.1} parent=1 // pred_check_branch
      %79 = sbr.rel (0) target = $region37
    $region36: #{tpu_custom_call.1} parent=1 // pred_region
      %81 = dma.done [#allocation6], 1024
    $region37: #{tpu_custom_call.1} parent=1 // pred_fallthru
      _
    // Predicated region
    $region38: #{tpu_custom_call.1} parent=1 // pred_check
      _
    $region39: #{tpu_custom_call.1} parent=1 // pred_check_branch
      %83 = sbr.rel (0) target = $region41
    $region40: #{tpu_custom_call.1} parent=1 // pred_region
      %85 = dma.done [#allocation6], 1024
    $region41: #{tpu_custom_call.1} parent=1 // pred_fallthru
      _
    // Predicated region
    $region42: #{tpu_custom_call.1} parent=1 // pred_check
      _
    $region43: #{tpu_custom_call.1} parent=1 // pred_check_branch
      %87 = sbr.rel (0) target = $region45
    $region44: #{tpu_custom_call.1} parent=1 // pred_region
      %89 = dma.done [#allocation9], 1024
    $region45: #{tpu_custom_call.1} parent=1 // pred_fallthru
      _
    %v90 = vld [vmem:[#allocation2] sm:$0xf]
    %v91 = vld [vmem:[#allocation5] sm:$0xf]
    %v92 = vld [vmem:[#allocation5 + $0x4] sm:$0xf]
    %v93 = vld [vmem:[#allocation5 + $0x8] sm:$0xf]
    %v94 = vld [vmem:[#allocation5 + $0xc] sm:$0xf]
    %v95 = vld [vmem:[#allocation5 + $0x10] sm:$0xf]
    %v96 = vld [vmem:[#allocation5 + $0x14] sm:$0xf]
    %v97 = vld [vmem:[#allocation5 + $0x18] sm:$0xf]
    %v98 = vld [vmem:[#allocation5 + $0x1c] sm:$0xf]
    %v99 = vld [vmem:[#allocation5 + $0x20] sm:$0xf]
    %v100 = vld [vmem:[#allocation5 + $0x24] sm:$0xf]
    %v101 = vld [vmem:[#allocation5 + $0x28] sm:$0xf]
    %v102 = vld [vmem:[#allocation5 + $0x2c] sm:$0xf]
    %v103 = vld [vmem:[#allocation5 + $0x30] sm:$0xf]
    %v104 = vld [vmem:[#allocation5 + $0x34] sm:$0xf]
    %v105 = vld [vmem:[#allocation5 + $0x38] sm:$0xf]
    %v106 = vld [vmem:[#allocation5 + $0x3c] sm:$0xf]
    %v107 = vld [vmem:[%s2] sm:$0x1]
    %v109 = vperm.slane %v107, 0
    %v127 = vunpack.c.l.b16 %v91
    %v128 = vunpack.c.l.b16 %v92
    %v129 = vunpack.c.l.b16 %v93
    %v130 = vunpack.c.l.b16 %v94
    %v131 = vunpack.c.l.b16 %v95
    %v132 = vunpack.c.l.b16 %v96
    %v133 = vunpack.c.l.b16 %v97
    %v134 = vunpack.c.l.b16 %v98
    %v135 = vunpack.c.l.b16 %v99
    %v136 = vunpack.c.l.b16 %v100
    %v137 = vunpack.c.l.b16 %v101
    %v138 = vunpack.c.l.b16 %v102
    %v139 = vunpack.c.l.b16 %v103
    %v140 = vunpack.c.l.b16 %v104
    %v141 = vunpack.c.l.b16 %v105
    %v142 = vunpack.c.l.b16 %v106
    %v143 = vpack.c.b16 %v128, %v127
    %v144 = vpack.c.b16 %v130, %v129
    %v145 = vpack.c.b16 %v132, %v131
    %v146 = vpack.c.b16 %v134, %v133
    %v147 = vpack.c.b16 %v136, %v135
    %v148 = vpack.c.b16 %v138, %v137
    %v149 = vpack.c.b16 %v140, %v139
    %v150 = vpack.c.b16 %v142, %v141
    %159 = vmatpush.bf16.msra.mxu0 %v150
    %160 = vmatpush.bf16.msra.mxu0 %v149
    %161 = vmatpush.bf16.msra.mxu0 %v148
    %162 = vmatpush.bf16.msra.mxu0 %v147
    %163 = vmatpush.bf16.msra.mxu0 %v146
    %164 = vmatpush.bf16.msra.mxu0 %v145
    %165 = vmatpush.bf16.msra.mxu0 %v144
    %166 = vmatpush.bf16.msra.mxu0 %v143
    %167 = vmatmul.bf16.gmra.mxu0 %v90
    %v168 = vpop.f32.mrf.mxu0
    %v169 = vadd.f32 %v109, %v168
    %v170 = vpop.f32.mrf.mxu0
    %171 = vdwg.mxu0
    %v172 = vmax.f32 %v169, 0.0
    %v173 = vpack.c.bf16 %v172, %v172
    %v174 = vld [vmem:[#allocation7] sm:$0xf]
    %v175 = vld [vmem:[#allocation7 + $0x4] sm:$0xf]
    %v176 = vld [vmem:[#allocation7 + $0x8] sm:$0xf]
    %v177 = vld [vmem:[#allocation7 + $0xc] sm:$0xf]
    %v178 = vld [vmem:[#allocation7 + $0x10] sm:$0xf]
    %v179 = vld [vmem:[#allocation7 + $0x14] sm:$0xf]
    %v180 = vld [vmem:[#allocation7 + $0x18] sm:$0xf]
    %v181 = vld [vmem:[#allocation7 + $0x1c] sm:$0xf]
    %v182 = vld [vmem:[#allocation7 + $0x20] sm:$0xf]
    %v183 = vld [vmem:[#allocation7 + $0x24] sm:$0xf]
    %v184 = vld [vmem:[#allocation7 + $0x28] sm:$0xf]
    %v185 = vld [vmem:[#allocation7 + $0x2c] sm:$0xf]
    %v186 = vld [vmem:[#allocation7 + $0x30] sm:$0xf]
    %v187 = vld [vmem:[#allocation7 + $0x34] sm:$0xf]
    %v188 = vld [vmem:[#allocation7 + $0x38] sm:$0xf]
    %v189 = vld [vmem:[#allocation7 + $0x3c] sm:$0xf]
    %v190 = vld [vmem:[%s4] sm:$0x1]
    %v192 = vperm.slane %v190, 0
    %v210 = vunpack.c.l.b16 %v174
    %v211 = vunpack.c.l.b16 %v175
    %v212 = vunpack.c.l.b16 %v176
    %v213 = vunpack.c.l.b16 %v177
    %v214 = vunpack.c.l.b16 %v178
    %v215 = vunpack.c.l.b16 %v179
    %v216 = vunpack.c.l.b16 %v180
    %v217 = vunpack.c.l.b16 %v181
    %v218 = vunpack.c.l.b16 %v182
    %v219 = vunpack.c.l.b16 %v183
    %v220 = vunpack.c.l.b16 %v184
    %v221 = vunpack.c.l.b16 %v185
    %v222 = vunpack.c.l.b16 %v186
    %v223 = vunpack.c.l.b16 %v187
    %v224 = vunpack.c.l.b16 %v188
    %v225 = vunpack.c.l.b16 %v189
    %v226 = vpack.c.b16 %v211, %v210
    %v227 = vpack.c.b16 %v213, %v212
    %v228 = vpack.c.b16 %v215, %v214
    %v229 = vpack.c.b16 %v217, %v216
    %v230 = vpack.c.b16 %v219, %v218
    %v231 = vpack.c.b16 %v221, %v220
    %v232 = vpack.c.b16 %v223, %v222
    %v233 = vpack.c.b16 %v225, %v224
    %242 = vmatpush.bf16.msra.mxu0 %v233
    %243 = vmatpush.bf16.msra.mxu0 %v232
    %244 = vmatpush.bf16.msra.mxu0 %v231
    %245 = vmatpush.bf16.msra.mxu0 %v230
    %246 = vmatpush.bf16.msra.mxu0 %v229
    %247 = vmatpush.bf16.msra.mxu0 %v228
    %248 = vmatpush.bf16.msra.mxu0 %v227
    %249 = vmatpush.bf16.msra.mxu0 %v226
    %250 = vmatmul.bf16.gmra.mxu0 %v173
    %v251 = vpop.f32.mrf.mxu0
    %v252 = vadd.f32 %v192, %v251
    %v253 = vpop.f32.mrf.mxu0
    %254 = vdwg.mxu0
    %v255 = vmax.f32 %v252, 0.0
    %v256 = vpack.c.bf16 %v255, %v255
    %v257 = vld [vmem:[#allocation8] sm:$0xf]
    %v258 = vld [vmem:[#allocation8 + $0x4] sm:$0xf]
    %v259 = vld [vmem:[#allocation8 + $0x8] sm:$0xf]
    %v260 = vld [vmem:[#allocation8 + $0xc] sm:$0xf]
    %v261 = vld [vmem:[#allocation8 + $0x10] sm:$0xf]
    %v262 = vld [vmem:[#allocation8 + $0x14] sm:$0xf]
    %v263 = vld [vmem:[#allocation8 + $0x18] sm:$0xf]
    %v264 = vld [vmem:[#allocation8 + $0x1c] sm:$0xf]
    %v265 = vld [vmem:[#allocation8 + $0x20] sm:$0xf]
    %v266 = vld [vmem:[#allocation8 + $0x24] sm:$0xf]
    %v267 = vld [vmem:[#allocation8 + $0x28] sm:$0xf]
    %v268 = vld [vmem:[#allocation8 + $0x2c] sm:$0xf]
    %v269 = vld [vmem:[#allocation8 + $0x30] sm:$0xf]
    %v270 = vld [vmem:[#allocation8 + $0x34] sm:$0xf]
    %v271 = vld [vmem:[#allocation8 + $0x38] sm:$0xf]
    %v272 = vld [vmem:[#allocation8 + $0x3c] sm:$0xf]
    %v273 = vld [vmem:[%s6] sm:$0x1]
    %v275 = vperm.slane %v273, 0
    %v293 = vunpack.c.l.b16 %v257
    %v294 = vunpack.c.l.b16 %v258
    %v295 = vunpack.c.l.b16 %v259
    %v296 = vunpack.c.l.b16 %v260
    %v297 = vunpack.c.l.b16 %v261
    %v298 = vunpack.c.l.b16 %v262
    %v299 = vunpack.c.l.b16 %v263
    %v300 = vunpack.c.l.b16 %v264
    %v301 = vunpack.c.l.b16 %v265
    %v302 = vunpack.c.l.b16 %v266
    %v303 = vunpack.c.l.b16 %v267
    %v304 = vunpack.c.l.b16 %v268
    %v305 = vunpack.c.l.b16 %v269
    %v306 = vunpack.c.l.b16 %v270
    %v307 = vunpack.c.l.b16 %v271
    %v308 = vunpack.c.l.b16 %v272
    %v309 = vpack.c.b16 %v294, %v293
    %v310 = vpack.c.b16 %v296, %v295
    %v311 = vpack.c.b16 %v298, %v297
    %v312 = vpack.c.b16 %v300, %v299
    %v313 = vpack.c.b16 %v302, %v301
    %v314 = vpack.c.b16 %v304, %v303
    %v315 = vpack.c.b16 %v306, %v305
    %v316 = vpack.c.b16 %v308, %v307
    %325 = vmatpush.bf16.msra.mxu0 %v316
    %326 = vmatpush.bf16.msra.mxu0 %v315
    %327 = vmatpush.bf16.msra.mxu0 %v314
    %328 = vmatpush.bf16.msra.mxu0 %v313
    %329 = vmatpush.bf16.msra.mxu0 %v312
    %330 = vmatpush.bf16.msra.mxu0 %v311
    %331 = vmatpush.bf16.msra.mxu0 %v310
    %332 = vmatpush.bf16.msra.mxu0 %v309
    %333 = vmatmul.bf16.gmra.mxu0 %v256
    %v334 = vpop.f32.mrf.mxu0
    %v335 = vadd.f32 %v275, %v334
    %v336 = vpop.f32.mrf.mxu0
    %337 = vdwg.mxu0
    %338 = vst [vmem:[#allocation10] sm:$0xff] %v335
    %v339 = vlaneseq
    %v340 = vand.u32 %v339, 127
    %vm341 = vcmp.lt.s32.totalorder %v340, 8
    %v342 = vsel %vm341, %v335, -inf
    %343 = vmax.xlane.f32.xlu0 %v342
    %v344 = vpop.xlane.xlu0 %343
    %vm345 = vcmp.eq.f32.partialorder %v342, %v344
    %v346 = vsel %vm345, %v340, 128
    %v347 = vand.u32 %v346, 65535
    %v348 = vshra.s32 %v346, 16
    %v349 = vcvt.s32.f32 %v347
    %v350 = vcvt.s32.f32 %v348
    %351 = vmin.xlane.f32.xlu0 %v350
    %v352 = vpop.xlane.xlu0 %351
    %vm353 = vcmp.eq.f32.partialorder %v350, %v352
    %v354 = vsel %vm353, %v349, inf
    %355 = vmin.xlane.f32.xlu0 %v354
    %v356 = vpop.xlane.xlu0 %355
    %v357 = vcvt.f32.s32 %v356
    %v358 = vcvt.f32.s32 %v352
    %v359 = vshll.u32 %v358, 16
    %v360 = vadd.s32 %v359, %v357
    %vm361 = vcmask 7168
    %362 = vst.msk [vmem:[%s8] sm:$0xff] %vm361, %v360
    // Predicated region
    $region46: #{tpu_custom_call.1} parent=1 // pred_check
      _
    $region47: #{tpu_custom_call.1} parent=1 // pred_check_branch
      %364 = sbr.rel (0) target = $region49
    $region48: #{tpu_custom_call.1} parent=1 // pred_region
      %366 = vsyncadd [#allocation4], 0
      %s368 = sshll.u32 [#allocation10], 4
      %s369 = int_to_ptr.vmem [resolvable:$true] %s368
      %s370 = sshll.u32 %s7, 4
      %s371 = int_to_ptr.hbm [resolvable:$true] %s370
      %373 = dma.vmem_to_hbm [thread:$0]  %s369, 128, %s371, [#allocation4]
    $region49: #{tpu_custom_call.1} parent=1 // pred_fallthru
      _
    // Predicated region
    $region50: #{tpu_custom_call.1} parent=1 // pred_check
      _
    $region51: #{tpu_custom_call.1} parent=1 // pred_check_branch
      %375 = sbr.rel (0) target = $region53
    $region52: #{tpu_custom_call.1} parent=1 // pred_region
      _
    $region53: #{tpu_custom_call.1} parent=1 // pred_fallthru
      _
    // Predicated region
    $region54: #{tpu_custom_call.1} parent=1 // pred_check
      _
    $region55: #{tpu_custom_call.1} parent=1 // pred_check_branch
      %377 = sbr.rel (0) target = $region57
    $region56: #{tpu_custom_call.1} parent=1 // pred_region
      %379 = dma.done [#allocation4], 128
    $region57: #{tpu_custom_call.1} parent=1 // pred_fallthru
      _
    // Predicated region
    $region58: #{tpu_custom_call.1} parent=1 // pred_check
      _
    $region59: #{tpu_custom_call.1} parent=1 // pred_check_branch
      %381 = sbr.rel (0) target = $region61
    $region60: #{tpu_custom_call.1} parent=1 // pred_region
      _
    $region61: #{tpu_custom_call.1} parent=1 // pred_fallthru
      _
    %382 = vsyncpa [#allocation3], 1
    %383 = vsyncpa [#allocation6], 1
    %384 = vsyncpa [#allocation9], 1
    %385 = vsyncpa [#allocation4], 1

</llo_original>
